<compile_context>
chip_gen: v7x
topology: tpu7x:2x2x1
jax: 0.10.0
libtpu: 0.0.40
codegen_flags: <defaults>
</compile_context>

<pallas_src>
import math
import functools

import jax
import jax.numpy as jnp
from jax import lax
from jax.experimental import pallas as pl
from jax.experimental.pallas import tpu as pltpu


def _round_up(x, m):
    return ((x + m - 1) // m) * m


def _pick_tile(size, unit, candidates=(512, 256, 128)):
    """Pick a tile size: full (rounded) extent if small, else the candidate
    (multiples of `unit`) that minimizes padding, preferring larger tiles."""
    padded = _round_up(size, unit)
    if padded <= min(candidates):
        return padded
    best_t, best_pad = None, None
    for t in candidates:  # descending -> prefer larger tile on ties
        pad = _round_up(size, t) - size
        if best_pad is None or pad < best_pad:
            best_t, best_pad = t, pad
    return best_t


def _working_set_bytes(tm, tn, tk, x_isz, w_isz, o_isz, with_acc):
    ws = (2 * tm * tk * x_isz          # double-buffered x tiles
          + 2 * tn * tk * w_isz        # double-buffered weight tiles
          + 2 * tm * tn * o_isz        # double-buffered output tiles
          + 2 * tn * 4)                # bias row (f32)
    if with_acc:
        ws += tm * tn * 4              # f32 accumulator scratch
    return ws


def _epilogue(y, b_f32, scale, apply_act, neg_slope, act_scale):
    y = y * jnp.float32(scale) + b_f32
    if apply_act:
        # act_scale folded into the select: one multiply per element.
        y = jnp.where(y >= 0,
                      jnp.float32(act_scale),
                      jnp.float32(act_scale * neg_slope)) * y
    return y


def _kernel_single_k(x_ref, w_ref, b_ref, o_ref, *,
                     scale, apply_act, neg_slope, act_scale):
    # x_ref: (tm, tk), w_ref: (tn, tk) native layout, b_ref: (1, tn) f32.
    y = lax.dot_general(x_ref[...], w_ref[...],
                        dimension_numbers=(((1,), (1,)), ((), ())),
                        preferred_element_type=jnp.float32)
    y = _epilogue(y, b_ref[...].astype(jnp.float32),
                  scale, apply_act, neg_slope, act_scale)
    o_ref[...] = y.astype(o_ref.dtype)


def _kernel_multi_k(x_ref, w_ref, b_ref, o_ref, acc_ref, *,
                    scale, apply_act, neg_slope, act_scale):
    k = pl.program_id(2)

    @pl.when(k == 0)
    def _():
        acc_ref[...] = jnp.zeros_like(acc_ref)

    acc_ref[...] += lax.dot_general(x_ref[...], w_ref[...],
                                    dimension_numbers=(((1,), (1,)), ((), ())),
                                    preferred_element_type=jnp.float32)

    @pl.when(k == pl.num_programs(2) - 1)
    def _():
        y = _epilogue(acc_ref[...], b_ref[...].astype(jnp.float32),
                      scale, apply_act, neg_slope, act_scale)
        o_ref[...] = y.astype(o_ref.dtype)


def equal_linear(x, weight, bias=None, *, lr_mul=1.0, activation=None,
                 _max_tk=None):
    """Pallas EqualLinear forward.

    x:      (batch, in_dim)
    weight: (out_dim, in_dim)   (native PyTorch F.linear layout, NOT transposed)
    bias:   (out_dim,) or None
    """
    batch, in_dim = x.shape
    out_dim, w_in = weight.shape
    assert w_in == in_dim

    scale = lr_mul / math.sqrt(in_dim)

    x_isz = jnp.dtype(x.dtype).itemsize
    w_isz = jnp.dtype(weight.dtype).itemsize
    o_isz = x_isz
    # dtype-aware sublane unit for the batch (M) dimension.
    sub = {4: 8, 2: 16, 1: 32}.get(x_isz, 8)

    # --- Tile selection (minimize padding, prefer larger tiles) ----------
    tm = _pick_tile(batch, sub)
    tn = _pick_tile(out_dim, 128)
    m_pad = _round_up(batch, tm)
    n_pad = _round_up(out_dim, tn)

    # v7x megacore: if the parallel grid would be a single step, split N so
    # both TensorCores get work (cheap no-op-ish on single-TC chips).
    if (m_pad // tm) * (n_pad // tn) == 1 and n_pad >= 256:
        tn = n_pad // 2 if (n_pad // 2) % 128 == 0 else 128

    # K tile: as large as possible under a ~40 MiB VMEM working-set budget
    # (safe even for v7x's 64 MiB per-TC VMEM), minimizing K padding.
    vmem_budget = 40 * 1024 * 1024
    k_min = _round_up(in_dim, 128)
    tk_candidates = sorted({2048, 1024, 512, 256, 128} | {min(k_min, 2048)},
                           reverse=True)
    if _max_tk is not None:
        tk_candidates = [c for c in tk_candidates if c <= _max_tk] or [128]
    tk, best_pad = 128, None
    for cand in tk_candidates:
        if _working_set_bytes(tm, tn, cand, x_isz, w_isz, o_isz,
                              with_acc=True) > vmem_budget:
            continue
        pad = _round_up(in_dim, cand) - in_dim
        if best_pad is None or pad < best_pad:
            tk, best_pad = cand, pad
    k_pad = _round_up(in_dim, tk)
    k_steps = k_pad // tk
    single_k = (k_steps == 1)

    ws = _working_set_bytes(tm, tn, tk, x_isz, w_isz, o_isz,
                            with_acc=not single_k)
    vmem_limit = int(max(32 << 20, min(48 << 20, int(ws * 1.5))))

    # --- One-time layout plumbing (skipped entirely when aligned) ---------
    if m_pad != batch or k_pad != in_dim:
        x_p = jnp.pad(x, ((0, m_pad - batch), (0, k_pad - in_dim)))
    else:
        x_p = x
    if n_pad != out_dim or k_pad != in_dim:
        w_p = jnp.pad(weight, ((0, n_pad - out_dim), (0, k_pad - in_dim)))
    else:
        w_p = weight
    if bias is None:
        b = jnp.zeros((out_dim,), jnp.float32)
    else:
        b = bias.astype(jnp.float32) * jnp.float32(lr_mul)
    if n_pad != out_dim:
        b = jnp.pad(b, (0, n_pad - out_dim))
    b_p = b.reshape(1, n_pad)

    static = dict(scale=scale, apply_act=activation is not None,
                  neg_slope=0.2, act_scale=2.0 ** 0.5)

    cost = pl.CostEstimate(
        flops=2 * m_pad * n_pad * k_pad,
        transcendentals=0,
        bytes_accessed=(m_pad * k_pad * x_isz + n_pad * k_pad * w_isz
                        + n_pad * 4 + m_pad * n_pad * o_isz),
    )

    if single_k:
        kernel = functools.partial(_kernel_single_k, **static)
        grid = (m_pad // tm, n_pad // tn)
        in_specs = [
            pl.BlockSpec((tm, tk), lambda i, j: (i, 0)),   # x tile
            pl.BlockSpec((tn, tk), lambda i, j: (j, 0)),   # W tile (native)
            pl.BlockSpec((1, tn), lambda i, j: (0, j)),    # bias row
        ]
        out_specs = pl.BlockSpec((tm, tn), lambda i, j: (i, j))
        scratch_shapes = []
        dim_sem = ("parallel", "parallel")
    else:
        kernel = functools.partial(_kernel_multi_k, **static)
        grid = (m_pad // tm, n_pad // tn, k_steps)
        in_specs = [
            pl.BlockSpec((tm, tk), lambda i, j, k: (i, k)),  # x tile
            pl.BlockSpec((tn, tk), lambda i, j, k: (j, k)),  # W tile (native)
            pl.BlockSpec((1, tn), lambda i, j, k: (0, j)),   # bias row
        ]
        out_specs = pl.BlockSpec((tm, tn), lambda i, j, k: (i, j))
        scratch_shapes = [pltpu.VMEM((tm, tn), jnp.float32)]
        dim_sem = ("parallel", "parallel", "arbitrary")

    out_padded = pl.pallas_call(
        kernel,
        out_shape=jax.ShapeDtypeStruct((m_pad, n_pad), x.dtype),
        grid_spec=pltpu.PrefetchScalarGridSpec(
            num_scalar_prefetch=0,
            grid=grid,
            in_specs=in_specs,
            out_specs=out_specs,
            scratch_shapes=scratch_shapes,
        ),
        compiler_params=pltpu.CompilerParams(
            dimension_semantics=dim_sem,
            vmem_limit_bytes=vmem_limit),
        cost_estimate=cost,
    )(x_p, w_p, b_p)

    if m_pad != batch or n_pad != out_dim:
        return out_padded[:batch, :out_dim]
    return out_padded


def _reference(x, weight, bias, *, lr_mul=1.0, activation=None):
    scale = lr_mul / math.sqrt(x.shape[1])
    out = x @ (weight * scale).T + (bias * lr_mul)[None, :]
    if activation is not None:
        out = (2.0 ** 0.5) * jnp.where(out >= 0, out, 0.2 * out)
    return out


if __name__ == "__main__":
    key = jax.random.PRNGKey(0)
    kx, kw, kx2, kw2 = jax.random.split(key, 4)

    # Case 1: small, non-128-aligned shapes (exercise padding + single-K path).
    batch, in_dim, out_dim = 16, 48, 32
    lr_mul = 0.01
    bias_init = 0.1
    x = jax.random.normal(kx, (batch, in_dim), dtype=jnp.float32)
    weight = jax.random.normal(kw, (out_dim, in_dim), dtype=jnp.float32) / lr_mul
    bias = jnp.full((out_dim,), bias_init, dtype=jnp.float32)

    out_lin = equal_linear(x, weight, bias, lr_mul=lr_mul, activation=None)
    out_act = equal_linear(x, weight, bias, lr_mul=lr_mul,
                           activation="fused_lrelu")
    jax.block_until_ready(out_lin)
    jax.block_until_ready(out_act)

    ref_lin = _reference(x, weight, bias, lr_mul=lr_mul, activation=None)
    ref_act = _reference(x, weight, bias, lr_mul=lr_mul,
                         activation="fused_lrelu")
    assert out_lin.shape == (batch, out_dim)
    assert jnp.allclose(out_lin, ref_lin, atol=1e-5, rtol=1e-5)
    assert jnp.allclose(out_act, ref_act, atol=1e-5, rtol=1e-5)

    # Case 2: force the multi-K accumulator path (small shapes, _max_tk=128).
    batch2, in_dim2, out_dim2 = 8, 256, 32
    x2 = jax.random.normal(kx2, (batch2, in_dim2), dtype=jnp.float32)
    w2 = jax.random.normal(kw2, (out_dim2, in_dim2), dtype=jnp.float32)
    b2 = jnp.full((out_dim2,), 0.5, dtype=jnp.float32)
    out2 = equal_linear(x2, w2, b2, lr_mul=1.0, activation="fused_lrelu",
                        _max_tk=128)
    jax.block_until_ready(out2)
    ref2 = _reference(x2, w2, b2, lr_mul=1.0, activation="fused_lrelu")
    assert jnp.allclose(out2, ref2, atol=1e-4, rtol=1e-5)

    print("KERNEL_OK")
</pallas_src>

<mosaic_0001>
module attributes {stable_mosaic.version = 11 : i64} {
  func.func @_kernel_single_k(%arg0: i32, %arg1: i32, %arg2: memref<16x128xf32, #tpu.memory_space<vmem>>, %arg3: memref<128x128xf32, #tpu.memory_space<vmem>>, %arg4: memref<1x128xf32, #tpu.memory_space<vmem>>, %arg5: memref<16x128xf32, #tpu.memory_space<vmem>>) attributes {dimension_semantics = [#tpu.dimension_semantics<parallel>, #tpu.dimension_semantics<parallel>], iteration_bounds = array<i64: 1, 1>, scalar_prefetch = 0 : i64, scratch_operands = 0 : i64, tpu.core_type = #tpu.core_type<tc>, window_params = [{transform_indices = @transform_0, window_bounds = array<i64: 16, 128>}, {transform_indices = @transform_1, window_bounds = array<i64: 128, 128>}, {transform_indices = @transform_2, window_bounds = array<i64: 1, 128>}, {transform_indices = @transform_3, window_bounds = array<i64: 16, 128>}]} {
    %c0 = arith.constant 0 : index
    %c0_0 = arith.constant 0 : index
    %0 = vector.load %arg2[%c0, %c0_0] : memref<16x128xf32, #tpu.memory_space<vmem>>, vector<16x128xf32>
    %c0_1 = arith.constant 0 : index
    %c0_2 = arith.constant 0 : index
    %1 = vector.load %arg3[%c0_1, %c0_2] : memref<128x128xf32, #tpu.memory_space<vmem>>, vector<128x128xf32>
    %cst = arith.constant dense<0.000000e+00> : vector<16x128xf32>
    %2 = tpu.matmul %0, %1, %cst {dimension_numbers = #tpu.dot_dimension_numbers<[1], [1], [0], [0], [0, 0, 1, 0], [], []>} : vector<16x128xf32>, vector<128x128xf32>, vector<16x128xf32> -> vector<16x128xf32>
    %c0_3 = arith.constant 0 : index
    %c0_4 = arith.constant 0 : index
    %3 = vector.load %arg4[%c0_3, %c0_4] : memref<1x128xf32, #tpu.memory_space<vmem>>, vector<1x128xf32>
    %cst_5 = arith.constant 0.00144337572 : f32
    %4 = vector.broadcast %cst_5 : f32 to vector<16x128xf32>
    %5 = arith.mulf %2, %4 : vector<16x128xf32>
    %6 = vector.broadcast %3 : vector<1x128xf32> to vector<16x128xf32>
    %7 = arith.addf %5, %6 : vector<16x128xf32>
    %c0_6 = arith.constant 0 : index
    %c0_7 = arith.constant 0 : index
    %8 = vector.load %arg5[%c0_6, %c0_7] : memref<16x128xf32, #tpu.memory_space<vmem>>, vector<16x128xf32>
    tpu.vector_store %arg5[%c0_6, %c0_7], %7 {strides = array<i32>} : memref<16x128xf32, #tpu.memory_space<vmem>>, vector<16x128xf32>,
    return
  }
  func.func @transform_0(%arg0: i32, %arg1: i32) -> (i32, i32) {
    %c0_i32 = arith.constant 0 : i32
    %c0_i32_0 = arith.constant 0 : i32
    return %arg0, %c0_i32 : i32, i32
  }
  func.func @transform_1(%arg0: i32, %arg1: i32) -> (i32, i32) {
    %c0_i32 = arith.constant 0 : i32
    %c0_i32_0 = arith.constant 0 : i32
    return %arg1, %c0_i32 : i32, i32
  }
  func.func @transform_2(%arg0: i32, %arg1: i32) -> (i32, i32) {
    %c0_i32 = arith.constant 0 : i32
    %c0_i32_0 = arith.constant 0 : i32
    return %c0_i32, %arg1 : i32, i32
  }
  func.func @transform_3(%arg0: i32, %arg1: i32) -> (i32, i32) {
    %c0_i32 = arith.constant 0 : i32
    return %arg0, %arg1 : i32, i32
  }
}

</mosaic_0001>

<llo_original>
// kernel: tpu_custom_call.1
$region0: #{tpu_custom_call.1}
  #allocation0 [shape = 'u32[]', space=smem, size = 0x4, offset = 0x4, fixed_abs, tag = 'smem constant byte address 0x4 - core index']
  #allocation1 [shape = 'u32[144,128]{1,0:T(1,128)}', space=vmem, size = 0x12000, scoped, tag = 'internal scratch']
  %s0 = inlined_call_operand.hbm [shape: f32[16,128], index: 0, kind: input, shape index: {}]
  %s1 = inlined_call_operand.hbm [shape: f32[128,128], index: 1, kind: input, shape index: {}]
  %s2 = inlined_call_operand.vmem [shape: f32[1,128], index: 2, kind: input, shape index: {}]
  %s3 = inlined_call_operand.hbm [shape: f32[16,128], index: 3, kind: output, shape index: {}]
  %s4 = sld [smem:[#allocation0]]
  $region30: #{tpu_custom_call.1} parent=0
    _
  %s6 = ssub.s32 1, %s4
  %s7 = scalar_select 0, %s6, %s4
  $region1: #{tpu_custom_call.1} parent=0
    #allocation2 [shape = 'u8[8192]{0}', space=vmem, size = 0x2000, scoped, tag = 'input window, operand 0, single buffered']
    #allocation3 [shape = 's32[1]{0}', space=sflag, size = 0x4, scoped, tag = 'scoped memory for tpu_custom_call.1']
    #allocation4 [shape = 's32[1]{0}', space=sflag, size = 0x4, scoped, tag = 'scoped memory for tpu_custom_call.1']
    #allocation5 [shape = 'u8[65536]{0}', space=vmem, size = 0x10000, scoped, tag = 'input window, operand 1, single buffered']
    #allocation6 [shape = 's32[1]{0}', space=sflag, size = 0x4, scoped, tag = 'scoped memory for tpu_custom_call.1']
    #allocation7 [shape = 'u8[8192]{0}', space=vmem, size = 0x2000, scoped, tag = 'output window, operand 0, single buffered']
    %8 = vsyncpa [#allocation3], 0
    %9 = vsyncpa [#allocation6], 0
    %10 = vsyncpa [#allocation4], 0
    // Predicated region
    $region2: #{tpu_custom_call.1} parent=1 // pred_check
      _
    $region3: #{tpu_custom_call.1} parent=1 // pred_check_branch
      %12 = sbr.rel (0) target = $region5
    $region4: #{tpu_custom_call.1} parent=1 // pred_region
      %s14 = ssub.s32 256, 256
      %15 = vsyncadd [#allocation3], %s14
      %s16 = sshll.u32 [#allocation2], 4
      %s17 = int_to_ptr.vmem [resolvable:$true] %s16
      %22 = dma.hbm_to_vmem [thread:$0]  %s0, 256, %s17, [#allocation3], 128, 128, 8
    $region5: #{tpu_custom_call.1} parent=1 // pred_fallthru
      _
    // Predicated region
    $region6: #{tpu_custom_call.1} parent=1 // pred_check
      _
    $region7: #{tpu_custom_call.1} parent=1 // pred_check_branch
      %24 = sbr.rel (0) target = $region9
    $region8: #{tpu_custom_call.1} parent=1 // pred_region
      %s26 = ssub.s32 2048, 2048
      %27 = vsyncadd [#allocation6], %s26
      %s28 = sshll.u32 [#allocation5], 4
      %s29 = int_to_ptr.vmem [resolvable:$true] %s28
      %34 = dma.hbm_to_vmem [thread:$0]  %s1, 2048, %s29, [#allocation6], 128, 128, 8
    $region9: #{tpu_custom_call.1} parent=1 // pred_fallthru
      _
    // Predicated region
    $region10: #{tpu_custom_call.1} parent=1 // pred_check
      _
    $region11: #{tpu_custom_call.1} parent=1 // pred_check_branch
      %36 = sbr.rel (0) target = $region13
    $region12: #{tpu_custom_call.1} parent=1 // pred_region
      _
    $region13: #{tpu_custom_call.1} parent=1 // pred_fallthru
      _
    // Predicated region
    $region14: #{tpu_custom_call.1} parent=1 // pred_check
      _
    $region15: #{tpu_custom_call.1} parent=1 // pred_check_branch
      %38 = sbr.rel (0) target = $region17
    $region16: #{tpu_custom_call.1} parent=1 // pred_region
      %39 = dma.done [#allocation3], 256
    $region17: #{tpu_custom_call.1} parent=1 // pred_fallthru
      _
    // Predicated region
    $region18: #{tpu_custom_call.1} parent=1 // pred_check
      _
    $region19: #{tpu_custom_call.1} parent=1 // pred_check_branch
      %41 = sbr.rel (0) target = $region21
    $region20: #{tpu_custom_call.1} parent=1 // pred_region
      %42 = dma.done [#allocation6], 2048
    $region21: #{tpu_custom_call.1} parent=1 // pred_fallthru
      _
    %v43 = vld [vmem:[#allocation2] sm:$0xff]
    %v44 = vld [vmem:[#allocation2 + $0x8] sm:$0xff]
    %v45 = vld [vmem:[#allocation5] sm:$0xff]
    %v46 = vld [vmem:[#allocation5 + $0x8] sm:$0xff]
    %v47 = vld [vmem:[#allocation5 + $0x10] sm:$0xff]
    %v48 = vld [vmem:[#allocation5 + $0x18] sm:$0xff]
    %v49 = vld [vmem:[#allocation5 + $0x20] sm:$0xff]
    %v50 = vld [vmem:[#allocation5 + $0x28] sm:$0xff]
    %v51 = vld [vmem:[#allocation5 + $0x30] sm:$0xff]
    %v52 = vld [vmem:[#allocation5 + $0x38] sm:$0xff]
    %v53 = vld [vmem:[#allocation5 + $0x40] sm:$0xff]
    %v54 = vld [vmem:[#allocation5 + $0x48] sm:$0xff]
    %v55 = vld [vmem:[#allocation5 + $0x50] sm:$0xff]
    %v56 = vld [vmem:[#allocation5 + $0x58] sm:$0xff]
    %v57 = vld [vmem:[#allocation5 + $0x60] sm:$0xff]
    %v58 = vld [vmem:[#allocation5 + $0x68] sm:$0xff]
    %v59 = vld [vmem:[#allocation5 + $0x70] sm:$0xff]
    %v60 = vld [vmem:[#allocation5 + $0x78] sm:$0xff]
    %61 = vmatprep.subr.mxu0 0.0
    %62 = vmatpush1.xpose.msra.mxu0 %v45
    %63 = vmatprep.subr.mxu0 0.0
    %64 = vmatpush1.xpose.msra.mxu0 %v46
    %65 = vmatprep.subr.mxu0 0.0
    %66 = vmatpush1.xpose.msra.mxu0 %v47
    %67 = vmatprep.subr.mxu0 0.0
    %68 = vmatpush1.xpose.msra.mxu0 %v48
    %69 = vmatprep.subr.mxu0 0.0
    %70 = vmatpush1.xpose.msra.mxu0 %v49
    %71 = vmatprep.subr.mxu0 0.0
    %72 = vmatpush1.xpose.msra.mxu0 %v50
    %73 = vmatprep.subr.mxu0 0.0
    %74 = vmatpush1.xpose.msra.mxu0 %v51
    %75 = vmatprep.subr.mxu0 0.0
    %76 = vmatpush1.xpose.msra.mxu0 %v52
    %77 = vmatprep.subr.mxu0 0.0
    %78 = vmatpush1.xpose.msra.mxu0 %v53
    %79 = vmatprep.subr.mxu0 0.0
    %80 = vmatpush1.xpose.msra.mxu0 %v54
    %81 = vmatprep.subr.mxu0 0.0
    %82 = vmatpush1.xpose.msra.mxu0 %v55
    %83 = vmatprep.subr.mxu0 0.0
    %84 = vmatpush1.xpose.msra.mxu0 %v56
    %85 = vmatprep.subr.mxu0 0.0
    %86 = vmatpush1.xpose.msra.mxu0 %v57
    %87 = vmatprep.subr.mxu0 0.0
    %88 = vmatpush1.xpose.msra.mxu0 %v58
    %89 = vmatprep.subr.mxu0 0.0
    %90 = vmatpush1.xpose.msra.mxu0 %v59
    %91 = vmatprep.subr.mxu0 0.0
    %92 = vmatpush1.xpose.msra.mxu0 %v60
    %93 = vmatprep.subr.mxu0 0.0
    %94 = vmatpush1.xpose.msra.mxu0 0.0
    %95 = vmatprep.subr.mxu0 0.0
    %96 = vmatpush1.xpose.msra.mxu0 0.0
    %97 = vmatprep.subr.mxu0 0.0
    %98 = vmatpush1.xpose.msra.mxu0 0.0
    %99 = vmatprep.subr.mxu0 0.0
    %100 = vmatpush1.xpose.msra.mxu0 0.0
    %101 = vmatprep.subr.mxu0 0.0
    %102 = vmatpush1.xpose.msra.mxu0 0.0
    %103 = vmatprep.subr.mxu0 0.0
    %104 = vmatpush1.xpose.msra.mxu0 0.0
    %105 = vmatprep.subr.mxu0 0.0
    %106 = vmatpush1.xpose.msra.mxu0 0.0
    %107 = vmatprep.subr.mxu0 0.0
    %108 = vmatpush1.xpose.msra.mxu0 0.0
    %109 = vmatprep.subr.mxu0 0.0
    %110 = vmatpush1.xpose.msra.mxu0 0.0
    %111 = vmatprep.subr.mxu0 0.0
    %112 = vmatpush1.xpose.msra.mxu0 0.0
    %113 = vmatprep.subr.mxu0 0.0
    %114 = vmatpush1.xpose.msra.mxu0 0.0
    %115 = vmatprep.subr.mxu0 0.0
    %116 = vmatpush1.xpose.msra.mxu0 0.0
    %117 = vmatprep.subr.mxu0 0.0
    %118 = vmatpush1.xpose.msra.mxu0 0.0
    %119 = vmatprep.subr.mxu0 0.0
    %120 = vmatpush1.xpose.msra.mxu0 0.0
    %121 = vmatprep.subr.mxu0 0.0
    %122 = vmatpush1.xpose.msra.mxu0 0.0
    %123 = vmatprep.subr.mxu0 0.0
    %124 = vmatpush1.xpose.msra.mxu0 0.0
    %125 = vmatprep.mubr.f32.mxu0 0.0
    %126 = vmatmul.mubr.f32.gmra.mrb[0].mxu0 %v43
    %v127 = vpop.f32.mrb[0].mxu0
    %v128 = vadd.f32 0.0, %v127
    %v129 = vpop.f32.mrb[0].mxu0
    %130 = vmatprep.mubr.f32.mxu0 0.0
    %131 = vmatmul.mubr.f32.gmra.mrb[0].mxu0 %v44
    %v132 = vpop.f32.mrb[0].mxu0
    %v133 = vadd.f32 0.0, %v132
    %v134 = vpop.f32.mrb[0].mxu0
    %135 = vdwg.mxu0
    %v136 = vld [vmem:[%s2] sm:$0x1]
    %v137 = vmul.f32 %v128, 0.0014433757
    %v138 = vmul.f32 %v133, 0.0014433757
    %v140 = vlaneseq
    %v141 = vshrl.u32 %v140, 7
    %v142 = vsub.s32 0, %v141
    %v143 = vrot.slane %v136, %v142
    %v145 = vadd.f32 %v137, %v143
    %v146 = vadd.f32 %v138, %v143
    %147 = vst [vmem:[#allocation7] sm:$0xff] %v145
    %148 = vst [vmem:[#allocation7 + $0x8] sm:$0xff] %v146
    // Predicated region
    $region22: #{tpu_custom_call.1} parent=1 // pred_check
      _
    $region23: #{tpu_custom_call.1} parent=1 // pred_check_branch
      %150 = sbr.rel (0) target = $region25
    $region24: #{tpu_custom_call.1} parent=1 // pred_region
      %s152 = ssub.s32 256, 256
      %153 = vsyncadd [#allocation4], %s152
      %s154 = sshll.u32 [#allocation7], 4
      %s155 = int_to_ptr.vmem [resolvable:$true] %s154
      %160 = dma.vmem_to_hbm [thread:$0]  %s155, 256, %s3, [#allocation4], 128, 128, 8
    $region25: #{tpu_custom_call.1} parent=1 // pred_fallthru
      _
    // Predicated region
    $region26: #{tpu_custom_call.1} parent=1 // pred_check
      _
    $region27: #{tpu_custom_call.1} parent=1 // pred_check_branch
      %162 = sbr.rel (0) target = $region29
    $region28: #{tpu_custom_call.1} parent=1 // pred_region
      %163 = dma.done [#allocation4], 256
    $region29: #{tpu_custom_call.1} parent=1 // pred_fallthru
      _
    %164 = vsyncpa [#allocation3], 1
    %165 = vsyncpa [#allocation6], 1
    %166 = vsyncpa [#allocation4], 1

</llo_original>
